<compile_context>
chip_gen: v5e
topology: v5e:2x2
jax: 0.10.0
libtpu: 0.0.40
codegen_flags: <defaults>
</compile_context>

<pallas_src>
import functools

import jax
import jax.numpy as jnp
from jax.experimental import pallas as pl
from jax.experimental.pallas import tpu as pltpu

_LANE = 128
_SUBLANE = 8


def _rup(v, m):
    return ((v + m - 1) // m) * m


# ----------------------------------------------------------------------------
# One-time hardware probes (run outside jit, results passed as static args).
# ----------------------------------------------------------------------------
@functools.lru_cache(maxsize=None)
def _roll_matches_jnp_roll() -> bool:
    """Probe pltpu.roll's shift convention once (it matches jnp.roll on current
    JAX releases); the bitonic network below is correct under either sign."""
    def kernel(x_ref, o_ref):
        o_ref[...] = pltpu.roll(x_ref[...], 1, axis=1)

    x = jnp.arange(8 * 128, dtype=jnp.float32).reshape(8, 128)
    out = pl.pallas_call(
        kernel, out_shape=jax.ShapeDtypeStruct((8, 128), jnp.float32))(x)
    return bool(out[0, 0] == x[0, 127])


@functools.lru_cache(maxsize=None)
def _is_single_tensorcore() -> bool:
    """v5e / v6e (and v2/v3 per-device) expose one TensorCore per JAX device;
    v4 / v5p / v7x are megacore (grid steps are sharded across 2 TCs)."""
    try:
        kind = jax.devices()[0].device_kind.lower()
    except Exception:
        return False
    return any(tag in kind for tag in ("lite", "v5e", "v6e", "v2", "v3"))


# ----------------------------------------------------------------------------
# Tiling helper: padded-(8,128)-footprint-aware batch tile choice.
# ----------------------------------------------------------------------------
def _choose_tb(batch, per_batch_bytes, budget_bytes, single_tc):
    cap = max(1, min(batch, budget_bytes // max(per_batch_bytes, 1)))
    if not single_tc and batch >= 2:
        # Megacore: keep >= 2 grid steps so both TensorCores get work.
        cap = max(1, min(cap, batch // 2))
    divisors = [t for t in range(1, cap + 1) if batch % t == 0]
    if not single_tc:
        even = [t for t in divisors if (batch // t) % 2 == 0]
        if even:                       # even step count -> no idle-TC tail step
            return max(even)
    return max(divisors)


# ----------------------------------------------------------------------------
# Shared in-kernel helpers.
# ----------------------------------------------------------------------------
def _project_and_mask(x, y, pr, n_real, npad):
    """x, y: [TB, npad, dpad]; pr: [TB, L, dpad] -> xp, yp: [TB, L, npad].
    Padded point lanes get a data-derived per-row sentinel that is identical in
    both clouds and >= every real value of that row, so after sorting they sit
    at the tail of BOTH arrays and contribute exactly 0 to the distance."""
    xp = jnp.einsum("bld,bnd->bln", pr, x, preferred_element_type=jnp.float32)
    yp = jnp.einsum("bld,bnd->bln", pr, y, preferred_element_type=jnp.float32)
    if n_real < npad:
        sent = jnp.max(jnp.maximum(xp, yp), axis=-1, keepdims=True) + 1.0
        lane = jax.lax.broadcasted_iota(jnp.int32, (1, 1, npad), 2)
        pad = lane >= n_real
        xp = jnp.where(pad, sent, xp)
        yp = jnp.where(pad, sent, yp)
    return xp, yp


def _bitonic_sort_lanes_pair(a, b, roll_jnp_like):
    """Sort a and b ([rows, n], n a power of two <= 128) ascending along the
    lane axis with a fixed bitonic compare-exchange network.  Lane permutations
    go through pltpu.roll (XLU slot); min/max/select stay on the VPU."""
    _, n = a.shape
    lane = jax.lax.broadcasted_iota(jnp.int32, (1, n), 1)   # masks on 1 vreg row
    fwd_shift = (lambda j: n - j) if roll_jnp_like else (lambda j: j)
    bwd_shift = (lambda j: j) if roll_jnp_like else (lambda j: n - j)

    def cmpex(v, j, low, take_min):
        fwd = pltpu.roll(v, fwd_shift(j), axis=1)    # fwd[i] = v[(i + j) % n]
        bwd = pltpu.roll(v, bwd_shift(j), axis=1)    # bwd[i] = v[(i - j) % n]
        partner = jnp.where(low, fwd, bwd)           # partner[i] = v[i XOR j]
        return jnp.where(take_min, jnp.minimum(v, partner),
                         jnp.maximum(v, partner))

    k = 2
    while k <= n:
        asc = (lane & k) == 0
        j = k // 2
        while j >= 1:
            low = (lane & j) == 0
            take_min = asc == low
            a = cmpex(a, j, low, take_min)
            b = cmpex(b, j, low, take_min)
            j //= 2
        k *= 2
    return a, b


def _weighted_root(sx, sy, *, p, f_type, eps):
    """sx, sy: [TB, L, npad] sorted along lanes -> per-batch loss [TB, 1]."""
    diff = sx - sy
    dist = jnp.sum(diff * diff, axis=-1)                    # [TB, L]; degree = 2
    if f_type == "identity":
        d = dist + eps
        num = jnp.sum(d * d, axis=-1, keepdims=True)
        den = jnp.sum(d, axis=-1, keepdims=True)
    else:  # 'exp' -> softmax over L (the max shift cancels in the ratio)
        m = jnp.max(dist, axis=-1, keepdims=True)
        e = jnp.exp(dist - m)
        num = jnp.sum(e * dist, axis=-1, keepdims=True)
        den = jnp.sum(e, axis=-1, keepdims=True)
    inner = num * pl.reciprocal(den, approx=True)           # EUP, ~free slot
    if p == 2.0:
        return jnp.sqrt(inner)
    return jnp.power(jnp.maximum(inner, 1e-30), 1.0 / p)    # guard power() at 0


# ----------------------------------------------------------------------------
# Kernels.
# ----------------------------------------------------------------------------
def _fused_kernel(x_ref, y_ref, proj_ref, out_ref, *, n_real, npad, p, f_type,
                  eps, roll_jnp_like):
    """Projection -> 128-lane bitonic sort -> distance/softmax/root, fused."""
    xp, yp = _project_and_mask(x_ref[...], y_ref[...], proj_ref[...], n_real, npad)
    tb, num_l, _ = xp.shape
    xs, ys = _bitonic_sort_lanes_pair(xp.reshape(tb * num_l, npad),
                                      yp.reshape(tb * num_l, npad),
                                      roll_jnp_like)
    res = _weighted_root(xs.reshape(tb, num_l, npad), ys.reshape(tb, num_l, npad),
                         p=p, f_type=f_type, eps=eps)
    out_ref[...] = res[:, :, None]                          # [TB, 1, 1]


def _proj_kernel(x_ref, y_ref, proj_ref, xp_ref, yp_ref, *, n_real, npad):
    xp, yp = _project_and_mask(x_ref[...], y_ref[...], proj_ref[...], n_real, npad)
    xp_ref[...] = xp
    yp_ref[...] = yp


def _loss_kernel(sx_ref, sy_ref, out_ref, *, p, f_type, eps):
    out_ref[...] = _weighted_root(sx_ref[...], sy_ref[...],
                                  p=p, f_type=f_type, eps=eps)[:, :, None]


# ----------------------------------------------------------------------------
# Public entry point.
# ----------------------------------------------------------------------------
def ebsw_is_loss(x, y, projections, *, p=2.0, f_type="exp", eps=0.0):
    """EBSW forward (IS / independent).  x, y: [B, N, dim]; projections: [B, L, dim]."""
    return _ebsw_is_loss_impl(
        x, y, projections, p=float(p), f_type=f_type, eps=float(eps),
        roll_jnp_like=_roll_matches_jnp_roll(), single_tc=_is_single_tensorcore())


@functools.partial(
    jax.jit,
    static_argnames=("p", "f_type", "eps", "roll_jnp_like", "single_tc"))
def _ebsw_is_loss_impl(x, y, projections, *, p, f_type, eps, roll_jnp_like,
                       single_tc):
    B, N, dim = x.shape
    L = projections.shape[1]
    dpad = _rup(dim, _SUBLANE)

    if single_tc:   # v5e / v6e: serial grid, fat single step, big scoped VMEM
        budget, vmem_limit = 32 << 20, 64 << 20
    else:           # v4 / v5p / v7x megacore: leave headroom vs 64 MiB per-TC
        budget, vmem_limit = 12 << 20, 32 << 20
    cparams = lambda: pltpu.CompilerParams(
        dimension_semantics=("parallel",), vmem_limit_bytes=vmem_limit)

    pq = jnp.pad(projections, ((0, 0), (0, 0), (0, dpad - dim)))

    if N <= _LANE:
        # ---- fused single-pass path: the point axis fits one vreg row. ----
        npad = _LANE
        xq = jnp.pad(x, ((0, 0), (0, npad - N), (0, dpad - dim)))
        yq = jnp.pad(y, ((0, 0), (0, npad - N), (0, dpad - dim)))

        # padded-(8,128) per-batch footprint: double-buffered inputs + temps.
        in_b = (2 * _rup(npad, 8) + _rup(L, 8)) * _rup(dpad, _LANE) * 4
        tmp_b = 8 * _rup(L, 8) * npad * 4
        tb = _choose_tb(B, 2 * in_b + tmp_b, budget, single_tc)

        per_batch = pl.pallas_call(
            functools.partial(_fused_kernel, n_real=N, npad=npad, p=p,
                              f_type=f_type, eps=eps,
                              roll_jnp_like=roll_jnp_like),
            out_shape=jax.ShapeDtypeStruct((B, 1, 1), jnp.float32),
            grid=(B // tb,),
            in_specs=[pl.BlockSpec((tb, npad, dpad), lambda b: (b, 0, 0)),
                      pl.BlockSpec((tb, npad, dpad), lambda b: (b, 0, 0)),
                      pl.BlockSpec((tb, L, dpad), lambda b: (b, 0, 0))],
            out_specs=pl.BlockSpec((tb, 1, 1), lambda b: (b, 0, 0)),
            compiler_params=cparams(),
        )(xq, yq, pq)
    else:
        # TODO(synk): N > 128 needs a multi-vreg merge network; until then the
        # sort between the two Pallas kernels stays in XLA (jnp.sort).
        npad = _rup(N, _LANE)
        xq = jnp.pad(x, ((0, 0), (0, npad - N), (0, dpad - dim)))
        yq = jnp.pad(y, ((0, 0), (0, npad - N), (0, dpad - dim)))

        in_b = (2 * _rup(npad, 8) + _rup(L, 8)) * _rup(dpad, _LANE) * 4
        out_b = 2 * _rup(L, 8) * npad * 4
        tb1 = _choose_tb(B, 2 * (in_b + out_b) + 2 * _rup(L, 8) * npad * 4,
                         budget, single_tc)
        xp, yp = pl.pallas_call(
            functools.partial(_proj_kernel, n_real=N, npad=npad),
            out_shape=(jax.ShapeDtypeStruct((B, L, npad), jnp.float32),
                       jax.ShapeDtypeStruct((B, L, npad), jnp.float32)),
            grid=(B // tb1,),
            in_specs=[pl.BlockSpec((tb1, npad, dpad), lambda b: (b, 0, 0)),
                      pl.BlockSpec((tb1, npad, dpad), lambda b: (b, 0, 0)),
                      pl.BlockSpec((tb1, L, dpad), lambda b: (b, 0, 0))],
            out_specs=(pl.BlockSpec((tb1, L, npad), lambda b: (b, 0, 0)),
                       pl.BlockSpec((tb1, L, npad), lambda b: (b, 0, 0))),
            compiler_params=cparams(),
        )(xq, yq, pq)

        sx = jnp.sort(xp, axis=-1)
        sy = jnp.sort(yp, axis=-1)

        io_b = 2 * 2 * _rup(L, 8) * npad * 4
        tb2 = _choose_tb(B, io_b + 2 * _rup(L, 8) * npad * 4, budget, single_tc)
        per_batch = pl.pallas_call(
            functools.partial(_loss_kernel, p=p, f_type=f_type, eps=eps),
            out_shape=jax.ShapeDtypeStruct((B, 1, 1), jnp.float32),
            grid=(B // tb2,),
            in_specs=[pl.BlockSpec((tb2, L, npad), lambda b: (b, 0, 0)),
                      pl.BlockSpec((tb2, L, npad), lambda b: (b, 0, 0))],
            out_specs=pl.BlockSpec((tb2, 1, 1), lambda b: (b, 0, 0)),
            compiler_params=cparams(),
        )(sx, sy)

    return jnp.mean(per_batch)


# ----------------------------------------------------------------------------
# Pure-JAX reference (mirrors the torch forward) for the correctness check.
# ----------------------------------------------------------------------------
def _reference_loss(x, y, projections, *, p=2.0, f_type="exp", eps=0.0):
    xproj = jnp.einsum("bnd,bld->bln", x, projections)
    yproj = jnp.einsum("bnd,bld->bln", y, projections)
    s = jnp.sort(xproj, axis=-1) - jnp.sort(yproj, axis=-1)
    distances = jnp.sum(jnp.abs(s) ** 2.0, axis=2)               # [B, L]
    if f_type == "identity":
        distances = distances + eps
        weights = distances / jnp.sum(distances, axis=1, keepdims=True)
    else:
        weights = jax.nn.softmax(distances, axis=1)
    return jnp.mean(jnp.power(jnp.sum(weights * distances, axis=1), 1.0 / p))


if __name__ == "__main__":
    key = jax.random.PRNGKey(0)
    p = 2.0
    configs = [
        dict(B=2, N=16, dim=3, L=128),
        dict(B=3, N=40, dim=3, L=64),
    ]
    for cfg in configs:
        kx, ky, kp, key = jax.random.split(key, 4)
        x = jax.random.normal(kx, (cfg["B"], cfg["N"], cfg["dim"]), jnp.float32)
        y = jax.random.normal(ky, (cfg["B"], cfg["N"], cfg["dim"]), jnp.float32)
        # minibatch_rand_projections: Gaussian projections, L2-normalized.
        proj = jax.random.normal(kp, (cfg["B"], cfg["L"], cfg["dim"]), jnp.float32)
        proj = proj / jnp.sqrt(jnp.sum(proj ** 2, axis=2, keepdims=True))

        loss = jax.block_until_ready(ebsw_is_loss(x, y, proj, p=p))
        ref = _reference_loss(x, y, proj, p=p)
        assert jnp.allclose(loss, ref, rtol=1e-3, atol=1e-6), (cfg, loss, ref)

    print("KERNEL_OK")
</pallas_src>

<mosaic_0001>
module attributes {stable_mosaic.version = 11 : i64} {
  func.func @kernel(%arg0: memref<8x128xf32, #tpu.memory_space<vmem>>, %arg1: memref<8x128xf32, #tpu.memory_space<vmem>>) attributes {dimension_semantics = [], scalar_prefetch = 0 : i64, scratch_operands = 0 : i64, tpu.core_type = #tpu.core_type<tc>} {
    %c0 = arith.constant 0 : index
    %c0_0 = arith.constant 0 : index
    %0 = vector.load %arg0[%c0, %c0_0] : memref<8x128xf32, #tpu.memory_space<vmem>>, vector<8x128xf32>
    %c1_i32 = arith.constant 1 : i32
    %1 = tpu.dynamic_rotate %0 by %c1_i32 dim 1 : vector<8x128xf32>, i32 -> vector<8x128xf32>
    %c0_1 = arith.constant 0 : index
    %c0_2 = arith.constant 0 : index
    %2 = vector.load %arg1[%c0_1, %c0_2] : memref<8x128xf32, #tpu.memory_space<vmem>>, vector<8x128xf32>
    tpu.vector_store %arg1[%c0_1, %c0_2], %1 {strides = array<i32>} : memref<8x128xf32, #tpu.memory_space<vmem>>, vector<8x128xf32>,
    return
  }
}

</mosaic_0001>

<llo_original>
// kernel: tpu_custom_call.1
$region0: #{tpu_custom_call.1}
  #allocation0 [shape = 'u32[]', space=smem, size = 0x4, offset = 0x4, fixed_abs, tag = 'smem constant byte address 0x4 - core index']
  #allocation1 [shape = 'u32[72,128]{1,0:T(1,128)}', space=vmem, size = 0x9000, scoped, tag = 'internal scratch']
  %s0 = inlined_call_operand.hbm [shape: f32[8,128], index: 0, kind: input, shape index: {}]
  %s1 = inlined_call_operand.hbm [shape: f32[8,128], index: 1, kind: output, shape index: {}]
  %s2 = sld [smem:[#allocation0]]
  $region18: #{tpu_custom_call.1} parent=0
    _
  %s4 = ssub.s32 1, %s2
  %s5 = scalar_select 0, %s4, %s2
  $region1: #{tpu_custom_call.1} parent=0
    #allocation2 [shape = 'u8[4096]{0}', space=vmem, size = 0x1000, scoped, tag = 'input window, operand 0, single buffered']
    #allocation3 [shape = 's32[1]{0}', space=sflag, size = 0x4, scoped, tag = 'scoped memory for tpu_custom_call.1']
    #allocation4 [shape = 's32[1]{0}', space=sflag, size = 0x4, scoped, tag = 'scoped memory for tpu_custom_call.1']
    #allocation5 [shape = 'u8[4096]{0}', space=vmem, size = 0x1000, scoped, tag = 'output window, operand 0, single buffered']
    %6 = vsyncpa [#allocation3], 0
    %7 = vsyncpa [#allocation4], 0
    // Predicated region
    $region2: #{tpu_custom_call.1} parent=1 // pred_check
      _
    $region3: #{tpu_custom_call.1} parent=1 // pred_check_branch
      %9 = sbr.rel (0) target = $region5
    $region4: #{tpu_custom_call.1} parent=1 // pred_region
      %11 = vsyncadd [#allocation3], 0
      %s13 = sshll.u32 %s0, 4
      %s14 = int_to_ptr.hbm [resolvable:$true] %s13
      %s15 = sshll.u32 [#allocation2], 4
      %s16 = int_to_ptr.vmem [resolvable:$true] %s15
      %18 = dma.hbm_to_vmem [thread:$0]  %s14, 128, %s16, [#allocation3]
    $region5: #{tpu_custom_call.1} parent=1 // pred_fallthru
      _
    // Predicated region
    $region6: #{tpu_custom_call.1} parent=1 // pred_check
      _
    $region7: #{tpu_custom_call.1} parent=1 // pred_check_branch
      %20 = sbr.rel (0) target = $region9
    $region8: #{tpu_custom_call.1} parent=1 // pred_region
      %22 = dma.done [#allocation3], 128
    $region9: #{tpu_custom_call.1} parent=1 // pred_fallthru
      _
    %v23 = vld [vmem:[#allocation2] sm:$0xff]
    %24 = vrot.lane.b32.xlu0 %v23, 1
    %v25 = vpop.permute.xlu0 %24
    %26 = vst [vmem:[#allocation5] sm:$0xff] %v25
    // Predicated region
    $region10: #{tpu_custom_call.1} parent=1 // pred_check
      _
    $region11: #{tpu_custom_call.1} parent=1 // pred_check_branch
      %28 = sbr.rel (0) target = $region13
    $region12: #{tpu_custom_call.1} parent=1 // pred_region
      %30 = vsyncadd [#allocation4], 0
      %s32 = sshll.u32 [#allocation5], 4
      %s33 = int_to_ptr.vmem [resolvable:$true] %s32
      %s34 = sshll.u32 %s1, 4
      %s35 = int_to_ptr.hbm [resolvable:$true] %s34
      %37 = dma.vmem_to_hbm [thread:$0]  %s33, 128, %s35, [#allocation4]
    $region13: #{tpu_custom_call.1} parent=1 // pred_fallthru
      _
    // Predicated region
    $region14: #{tpu_custom_call.1} parent=1 // pred_check
      _
    $region15: #{tpu_custom_call.1} parent=1 // pred_check_branch
      %39 = sbr.rel (0) target = $region17
    $region16: #{tpu_custom_call.1} parent=1 // pred_region
      %41 = dma.done [#allocation4], 128
    $region17: #{tpu_custom_call.1} parent=1 // pred_fallthru
      _
    %42 = vsyncpa [#allocation3], 1
    %43 = vsyncpa [#allocation4], 1

</llo_original>
